<compile_context>
chip_gen: v6e
topology: v6e:2x2x1
jax: 0.10.0
libtpu: 0.0.40
codegen_flags: <defaults>
</compile_context>

<pallas_src>
import functools

import jax
import jax.numpy as jnp
from jax.experimental import pallas as pl
from jax.experimental.pallas import tpu as pltpu


def _swish(v):
    return v * jax.nn.sigmoid(v)


def _ensemble_kernel(
    xy_ref, w1_ref, wmid_ref, w5_ref, b_ref, maxlv_ref, minlv_ref,
    out_ref, *, D, H2, ret_log_var,
):
    """One grid step == (ensemble member e, batch tile n). Full fused 2-branch MLP."""
    xy = xy_ref[0]                                                # (TN, K_in)

    # Layer 1: block-diagonal(nn1, sn1) on [x | y] -> (TN, 2H)
    h = jnp.dot(xy, w1_ref[0], preferred_element_type=jnp.float32)
    h = _swish(h + b_ref[0, 0:1, :H2])

    # Layers 2..4: block-diagonal(nn_i, sn_i), (2H, 2H)
    for l in range(3):
        h = jnp.dot(h, wmid_ref[0, l], preferred_element_type=jnp.float32)
        h = _swish(h + b_ref[0, l + 1:l + 2, :H2])

    # Layer 5: wide weight whose columns are [mean | raw_logvar | nn5 | sn5]
    z = jnp.dot(h, w5_ref[0], preferred_element_type=jnp.float32)  # (TN, 6D)
    z = z + b_ref[0, 4:5, :6 * D]

    # Transform only the raw-logvar lanes (D:2D) with the softplus clamps / exp.
    col = jax.lax.broadcasted_iota(jnp.int32, z.shape, 1)
    lv_mask = jnp.logical_and(col >= D, col < 2 * D)

    max_w = maxlv_ref[...]                                         # (1, 6D)
    min_w = minlv_ref[...]                                         # (1, 6D)
    lv = max_w - jax.nn.softplus(max_w - z)
    lv = min_w + jax.nn.softplus(lv - min_w)
    if not ret_log_var:
        lv = jnp.exp(lv)

    out_ref[0] = jnp.where(lv_mask, lv, z)


def _block_diag(a, b):
    """a: (E, ia, oa), b: (E, ib, ob) -> (E, ia+ib, oa+ob) block-diagonal."""
    E, ia, oa = a.shape
    _, ib, ob = b.shape
    top = jnp.concatenate([a, jnp.zeros((E, ia, ob), a.dtype)], axis=2)
    bot = jnp.concatenate([jnp.zeros((E, ib, oa), b.dtype), b], axis=2)
    return jnp.concatenate([top, bot], axis=1)


def _pack_params(params, D):
    """Pack the 10 (w, b) pairs into 4 slabs consumed by the kernel."""
    nn, sn = params["nn"], params["sn"]
    H = nn[0][0].shape[-1]
    H2 = 2 * H

    W1 = _block_diag(nn[0][0], sn[0][0])                           # (E, K_in, 2H)
    Wmid = jnp.stack(
        [_block_diag(nn[i][0], sn[i][0]) for i in (1, 2, 3)], axis=1
    )                                                              # (E, 3, 2H, 2H)

    nw5, nb5 = nn[4]
    sw5, sb5 = sn[4]
    zeros_n = jnp.zeros_like(nw5)                                  # (E, H, 2D)
    zeros_s = jnp.zeros_like(sw5)
    # Column layout: [mean+lv (2D, summed over branches) | nn5 (2D) | sn5 (2D)]
    top = jnp.concatenate([nw5, nw5, zeros_n], axis=2)             # rows for h_nn
    bot = jnp.concatenate([sw5, zeros_s, sw5], axis=2)             # rows for h_sn
    W5 = jnp.concatenate([top, bot], axis=1)                       # (E, 2H, 6D)

    b5wide = jnp.concatenate([nb5 + sb5, nb5, sb5], axis=-1)       # (E, 6D)

    BP = max(H2, 6 * D)
    rows = []
    for i in range(4):
        b = jnp.concatenate([nn[i][1], sn[i][1]], axis=-1)         # (E, 2H)
        rows.append(jnp.pad(b, ((0, 0), (0, BP - b.shape[-1]))))
    rows.append(jnp.pad(b5wide, ((0, 0), (0, BP - b5wide.shape[-1]))))
    Ball = jnp.stack(rows, axis=1)                                 # (E, 5, BP)
    return W1, Wmid, W5, Ball


def _round_up(v, m):
    return ((v + m - 1) // m) * m


@functools.partial(jax.jit, static_argnames=("ret_log_var",))
def ensemble_model_forward(x, y, params, max_logvar, min_logvar, ret_log_var=False):
    x = x.astype(jnp.float32)
    y = y.astype(jnp.float32)
    E, N, in_sa = x.shape
    _, _, in_s = y.shape
    D = max_logvar.shape[-1]
    H = params["nn"][0][0].shape[-1]
    H2 = 2 * H
    K_in = in_sa + in_s

    W1, Wmid, W5, Ball = _pack_params(params, D)
    BP = Ball.shape[-1]

    # Widen the logvar bounds to 6D lanes (only lanes D:2D are ever selected).
    maxlv_w = jnp.zeros((1, 6 * D), jnp.float32).at[:, D:2 * D].set(max_logvar)
    minlv_w = jnp.zeros((1, 6 * D), jnp.float32).at[:, D:2 * D].set(min_logvar)

    # Single fused input [x | y].
    xy = jnp.concatenate([x, y], axis=-1)                          # (E, N, K_in)

    # Batch tiling: TN multiple of 8, capped at 512; pad N if needed.
    TN = _round_up(N, 8)
    if TN > 512:
        TN = 512
    N_pad = _round_up(max(N, TN), TN)
    if N_pad != N:
        xy = jnp.pad(xy, ((0, 0), (0, N_pad - N), (0, 0)))
    nt = N_pad // TN

    kernel = functools.partial(
        _ensemble_kernel, D=D, H2=H2, ret_log_var=ret_log_var
    )

    packed = pl.pallas_call(
        kernel,
        out_shape=jax.ShapeDtypeStruct((E, N_pad, 6 * D), jnp.float32),
        grid_spec=pltpu.PrefetchScalarGridSpec(
            num_scalar_prefetch=0,
            grid=(E, nt),  # N axis innermost -> weight blocks stay resident
            in_specs=[
                pl.BlockSpec((1, TN, K_in), lambda e, n: (e, n, 0)),      # xy
                pl.BlockSpec((1, K_in, H2), lambda e, n: (e, 0, 0)),      # W1
                pl.BlockSpec((1, 3, H2, H2), lambda e, n: (e, 0, 0, 0)),  # Wmid
                pl.BlockSpec((1, H2, 6 * D), lambda e, n: (e, 0, 0)),     # W5
                pl.BlockSpec((1, 5, BP), lambda e, n: (e, 0, 0)),         # biases
                pl.BlockSpec((1, 6 * D), lambda e, n: (0, 0)),            # max_logvar
                pl.BlockSpec((1, 6 * D), lambda e, n: (0, 0)),            # min_logvar
            ],
            out_specs=pl.BlockSpec((1, TN, 6 * D), lambda e, n: (e, n, 0)),
        ),
        compiler_params=pltpu.CompilerParams(
            dimension_semantics=("parallel", "parallel"),
            vmem_limit_bytes=32 * 1024 * 1024,
        ),
    )(xy, W1, Wmid, W5, Ball, maxlv_w, minlv_w)

    packed = packed[:, :N, :]
    mean = packed[..., :D]
    var = packed[..., D:2 * D]          # logvar if ret_log_var else exp(logvar)
    nn5 = packed[..., 2 * D:4 * D]
    sn5 = packed[..., 4 * D:]
    return mean, var, nn5, sn5


def init_params(key, state_size, action_size, reward_size, ensemble_size, hidden_size):
    """Truncated-normal init matching init_weights (std = 1/(2*sqrt(in)))."""
    output_dim = state_size + reward_size
    nn_dims = [
        (state_size + action_size, hidden_size),
        (hidden_size, hidden_size),
        (hidden_size, hidden_size),
        (hidden_size, hidden_size),
        (hidden_size, 2 * output_dim),
    ]
    sn_dims = [
        (state_size, hidden_size),
        (hidden_size, hidden_size),
        (hidden_size, hidden_size),
        (hidden_size, hidden_size),
        (hidden_size, 2 * output_dim),
    ]
    keys = jax.random.split(key, 10)

    def make(k, d_in, d_out):
        std = 1.0 / (2.0 * float(d_in) ** 0.5)
        w = jax.random.truncated_normal(
            k, -2.0, 2.0, (ensemble_size, d_in, d_out), jnp.float32
        ) * std
        b = jnp.zeros((ensemble_size, d_out), jnp.float32)
        return w, b

    params = {
        "nn": [make(keys[i], *nn_dims[i]) for i in range(5)],
        "sn": [make(keys[5 + i], *sn_dims[i]) for i in range(5)],
    }
    max_logvar = jnp.ones((1, output_dim), jnp.float32) * 0.5
    min_logvar = -jnp.ones((1, output_dim), jnp.float32) * 10.0
    return params, max_logvar, min_logvar


def _reference_forward(x, y, params, max_logvar, min_logvar, ret_log_var=False):
    """Pure-JAX reference identical to the PyTorch forward."""
    def fc(h, w, b, act):
        out = jnp.einsum("eni,eio->eno", h, w) + b[:, None, :]
        return _swish(out) if act else out

    h = x
    for i, (w, b) in enumerate(params["nn"]):
        h = fc(h, w, b, act=(i < 4))
    nn5 = h
    g = y
    for i, (w, b) in enumerate(params["sn"]):
        g = fc(g, w, b, act=(i < 4))
    sn5 = g
    out = nn5 + sn5
    D = max_logvar.shape[-1]
    mean = out[:, :, :D]
    logvar = max_logvar - jax.nn.softplus(max_logvar - out[:, :, D:])
    logvar = min_logvar + jax.nn.softplus(logvar - min_logvar)
    var = logvar if ret_log_var else jnp.exp(logvar)
    return mean, var, nn5, sn5


if __name__ == "__main__":
    state_size = 16
    action_size = 8
    reward_size = 2
    ensemble_size = 4
    hidden_size = 32
    N = 8  # batch per ensemble member

    key = jax.random.PRNGKey(0)
    k_param, k_x, k_y = jax.random.split(key, 3)
    params, max_logvar, min_logvar = init_params(
        k_param, state_size, action_size, reward_size, ensemble_size, hidden_size
    )
    x = jax.random.normal(
        k_x, (ensemble_size, N, state_size + action_size), jnp.float32
    )
    y = x[:, :, :state_size]  # state-only branch consumes the state portion

    mean, var, nn5, sn5 = ensemble_model_forward(
        x, y, params, max_logvar, min_logvar, ret_log_var=False
    )
    jax.block_until_ready((mean, var, nn5, sn5))

    # sanity check against pure-JAX reference
    r_mean, r_var, r_nn5, r_sn5 = _reference_forward(
        x, y, params, max_logvar, min_logvar, ret_log_var=False
    )
    assert jnp.allclose(mean, r_mean, atol=1e-4, rtol=1e-4)
    assert jnp.allclose(var, r_var, atol=1e-4, rtol=1e-4)
    assert jnp.allclose(nn5, r_nn5, atol=1e-4, rtol=1e-4)
    assert jnp.allclose(sn5, r_sn5, atol=1e-4, rtol=1e-4)

    # also exercise the ret_log_var=True path once
    lmean, llogvar, _, _ = ensemble_model_forward(
        x, y, params, max_logvar, min_logvar, ret_log_var=True
    )
    jax.block_until_ready((lmean, llogvar))
    _, r_logvar, _, _ = _reference_forward(
        x, y, params, max_logvar, min_logvar, ret_log_var=True
    )
    assert jnp.allclose(llogvar, r_logvar, atol=1e-4, rtol=1e-4)

    print("KERNEL_OK")
</pallas_src>

<mosaic_0001>
module attributes {stable_mosaic.version = 11 : i64} {
  func.func @_ensemble_kernel(%arg0: i32, %arg1: i32, %arg2: memref<1x8x40xf32, #tpu.memory_space<vmem>>, %arg3: memref<1x40x64xf32, #tpu.memory_space<vmem>>, %arg4: memref<1x3x64x64xf32, #tpu.memory_space<vmem>>, %arg5: memref<1x64x108xf32, #tpu.memory_space<vmem>>, %arg6: memref<1x5x108xf32, #tpu.memory_space<vmem>>, %arg7: memref<1x108xf32, #tpu.memory_space<vmem>>, %arg8: memref<1x108xf32, #tpu.memory_space<vmem>>, %arg9: memref<1x8x108xf32, #tpu.memory_space<vmem>>) attributes {dimension_semantics = [#tpu.dimension_semantics<parallel>, #tpu.dimension_semantics<parallel>], iteration_bounds = array<i64: 4, 1>, scalar_prefetch = 0 : i64, scratch_operands = 0 : i64, tpu.core_type = #tpu.core_type<tc>, window_params = [{transform_indices = @transform_0, window_bounds = array<i64: 1, 8, 40>}, {transform_indices = @transform_1, window_bounds = array<i64: 1, 40, 64>}, {transform_indices = @transform_2, window_bounds = array<i64: 1, 3, 64, 64>}, {transform_indices = @transform_3, window_bounds = array<i64: 1, 64, 108>}, {transform_indices = @transform_4, window_bounds = array<i64: 1, 5, 108>}, {pipeline_mode = #tpu.pipeline_mode<synchronous>, transform_indices = @transform_5, window_bounds = array<i64: 1, 108>}, {pipeline_mode = #tpu.pipeline_mode<synchronous>, transform_indices = @transform_6, window_bounds = array<i64: 1, 108>}, {transform_indices = @transform_7, window_bounds = array<i64: 1, 8, 108>}]} {
    %c0 = arith.constant 0 : index
    %c0_0 = arith.constant 0 : index
    %c0_1 = arith.constant 0 : index
    %0 = vector.load %arg2[%c0, %c0_0, %c0_1] : memref<1x8x40xf32, #tpu.memory_space<vmem>>, vector<1x8x40xf32>
    %1 = vector.shape_cast %0 : vector<1x8x40xf32> to vector<8x40xf32>
    %c0_2 = arith.constant 0 : index
    %c0_3 = arith.constant 0 : index
    %c0_4 = arith.constant 0 : index
    %2 = vector.load %arg3[%c0_2, %c0_3, %c0_4] : memref<1x40x64xf32, #tpu.memory_space<vmem>>, vector<1x40x64xf32>
    %3 = vector.shape_cast %2 : vector<1x40x64xf32> to vector<40x64xf32>
    %cst = arith.constant dense<0.000000e+00> : vector<8x64xf32>
    %4 = tpu.matmul %1, %3, %cst {dimension_numbers = #tpu.dot_dimension_numbers<[1], [0], [0], [1], [0, 0, 1, 1], [], []>} : vector<8x40xf32>, vector<40x64xf32>, vector<8x64xf32> -> vector<8x64xf32>
    %c0_5 = arith.constant 0 : index
    %c0_6 = arith.constant 0 : index
    %c0_7 = arith.constant 0 : index
    %5 = vector.load %arg6[%c0_5, %c0_6, %c0_7] : memref<1x5x108xf32, #tpu.memory_space<vmem>>, vector<1x1x64xf32>
    %6 = vector.shape_cast %5 : vector<1x1x64xf32> to vector<1x64xf32>
    %7 = vector.broadcast %6 : vector<1x64xf32> to vector<8x64xf32>
    %8 = arith.addf %4, %7 : vector<8x64xf32>
    %9 = arith.negf %8 : vector<8x64xf32>
    %10 = math.exp %9 : vector<8x64xf32>
    %cst_8 = arith.constant 1.000000e+00 : f32
    %11 = vector.broadcast %cst_8 : f32 to vector<8x64xf32>
    %12 = arith.addf %11, %10 : vector<8x64xf32>
    %13 = arith.divf %11, %12 : vector<8x64xf32>
    %14 = arith.mulf %8, %13 : vector<8x64xf32>
    %c0_9 = arith.constant 0 : index
    %c0_10 = arith.constant 0 : index
    %c0_11 = arith.constant 0 : index
    %c0_12 = arith.constant 0 : index
    %15 = vector.load %arg4[%c0_9, %c0_10, %c0_11, %c0_12] : memref<1x3x64x64xf32, #tpu.memory_space<vmem>>, vector<1x1x64x64xf32>
    %16 = vector.shape_cast %15 : vector<1x1x64x64xf32> to vector<64x64xf32>
    %cst_13 = arith.constant dense<0.000000e+00> : vector<8x64xf32>
    %17 = tpu.matmul %14, %16, %cst_13 {dimension_numbers = #tpu.dot_dimension_numbers<[1], [0], [0], [1], [0, 0, 1, 1], [], []>} : vector<8x64xf32>, vector<64x64xf32>, vector<8x64xf32> -> vector<8x64xf32>
    %c0_14 = arith.constant 0 : index
    %c1 = arith.constant 1 : index
    %c0_15 = arith.constant 0 : index
    %18 = vector.load %arg6[%c0_14, %c1, %c0_15] : memref<1x5x108xf32, #tpu.memory_space<vmem>>, vector<1x1x64xf32>
    %19 = vector.shape_cast %18 : vector<1x1x64xf32> to vector<1x64xf32>
    %20 = vector.broadcast %19 : vector<1x64xf32> to vector<8x64xf32>
    %21 = arith.addf %17, %20 : vector<8x64xf32>
    %22 = arith.negf %21 : vector<8x64xf32>
    %23 = math.exp %22 : vector<8x64xf32>
    %cst_16 = arith.constant 1.000000e+00 : f32
    %24 = vector.broadcast %cst_16 : f32 to vector<8x64xf32>
    %25 = arith.addf %24, %23 : vector<8x64xf32>
    %26 = arith.divf %24, %25 : vector<8x64xf32>
    %27 = arith.mulf %21, %26 : vector<8x64xf32>
    %c0_17 = arith.constant 0 : index
    %c1_18 = arith.constant 1 : index
    %c0_19 = arith.constant 0 : index
    %c0_20 = arith.constant 0 : index
    %28 = vector.load %arg4[%c0_17, %c1_18, %c0_19, %c0_20] : memref<1x3x64x64xf32, #tpu.memory_space<vmem>>, vector<1x1x64x64xf32>
    %29 = vector.shape_cast %28 : vector<1x1x64x64xf32> to vector<64x64xf32>
    %cst_21 = arith.constant dense<0.000000e+00> : vector<8x64xf32>
    %30 = tpu.matmul %27, %29, %cst_21 {dimension_numbers = #tpu.dot_dimension_numbers<[1], [0], [0], [1], [0, 0, 1, 1], [], []>} : vector<8x64xf32>, vector<64x64xf32>, vector<8x64xf32> -> vector<8x64xf32>
    %c0_22 = arith.constant 0 : index
    %c2 = arith.constant 2 : index
    %c0_23 = arith.constant 0 : index
    %31 = vector.load %arg6[%c0_22, %c2, %c0_23] : memref<1x5x108xf32, #tpu.memory_space<vmem>>, vector<1x1x64xf32>
    %32 = vector.shape_cast %31 : vector<1x1x64xf32> to vector<1x64xf32>
    %33 = vector.broadcast %32 : vector<1x64xf32> to vector<8x64xf32>
    %34 = arith.addf %30, %33 : vector<8x64xf32>
    %35 = arith.negf %34 : vector<8x64xf32>
    %36 = math.exp %35 : vector<8x64xf32>
    %cst_24 = arith.constant 1.000000e+00 : f32
    %37 = vector.broadcast %cst_24 : f32 to vector<8x64xf32>
    %38 = arith.addf %37, %36 : vector<8x64xf32>
    %39 = arith.divf %37, %38 : vector<8x64xf32>
    %40 = arith.mulf %34, %39 : vector<8x64xf32>
    %c0_25 = arith.constant 0 : index
    %c2_26 = arith.constant 2 : index
    %c0_27 = arith.constant 0 : index
    %c0_28 = arith.constant 0 : index
    %41 = vector.load %arg4[%c0_25, %c2_26, %c0_27, %c0_28] : memref<1x3x64x64xf32, #tpu.memory_space<vmem>>, vector<1x1x64x64xf32>
    %42 = vector.shape_cast %41 : vector<1x1x64x64xf32> to vector<64x64xf32>
    %cst_29 = arith.constant dense<0.000000e+00> : vector<8x64xf32>
    %43 = tpu.matmul %40, %42, %cst_29 {dimension_numbers = #tpu.dot_dimension_numbers<[1], [0], [0], [1], [0, 0, 1, 1], [], []>} : vector<8x64xf32>, vector<64x64xf32>, vector<8x64xf32> -> vector<8x64xf32>
    %c0_30 = arith.constant 0 : index
    %c3 = arith.constant 3 : index
    %c0_31 = arith.constant 0 : index
    %44 = vector.load %arg6[%c0_30, %c3, %c0_31] : memref<1x5x108xf32, #tpu.memory_space<vmem>>, vector<1x1x64xf32>
    %45 = vector.shape_cast %44 : vector<1x1x64xf32> to vector<1x64xf32>
    %46 = vector.broadcast %45 : vector<1x64xf32> to vector<8x64xf32>
    %47 = arith.addf %43, %46 : vector<8x64xf32>
    %48 = arith.negf %47 : vector<8x64xf32>
    %49 = math.exp %48 : vector<8x64xf32>
    %cst_32 = arith.constant 1.000000e+00 : f32
    %50 = vector.broadcast %cst_32 : f32 to vector<8x64xf32>
    %51 = arith.addf %50, %49 : vector<8x64xf32>
    %52 = arith.divf %50, %51 : vector<8x64xf32>
    %53 = arith.mulf %47, %52 : vector<8x64xf32>
    %c0_33 = arith.constant 0 : index
    %c0_34 = arith.constant 0 : index
    %c0_35 = arith.constant 0 : index
    %54 = vector.load %arg5[%c0_33, %c0_34, %c0_35] : memref<1x64x108xf32, #tpu.memory_space<vmem>>, vector<1x64x108xf32>
    %55 = vector.shape_cast %54 : vector<1x64x108xf32> to vector<64x108xf32>
    %cst_36 = arith.constant dense<0.000000e+00> : vector<8x108xf32>
    %56 = tpu.matmul %53, %55, %cst_36 {dimension_numbers = #tpu.dot_dimension_numbers<[1], [0], [0], [1], [0, 0, 1, 1], [], []>} : vector<8x64xf32>, vector<64x108xf32>, vector<8x108xf32> -> vector<8x108xf32>
    %c0_37 = arith.constant 0 : index
    %c4 = arith.constant 4 : index
    %c0_38 = arith.constant 0 : index
    %57 = vector.load %arg6[%c0_37, %c4, %c0_38] : memref<1x5x108xf32, #tpu.memory_space<vmem>>, vector<1x1x108xf32>
    %58 = vector.shape_cast %57 : vector<1x1x108xf32> to vector<1x108xf32>
    %59 = vector.broadcast %58 : vector<1x108xf32> to vector<8x108xf32>
    %60 = arith.addf %56, %59 : vector<8x108xf32>
    %61 = tpu.iota {dimensions = array<i32: 1>} : vector<8x108xi32>
    %c18_i32 = arith.constant 18 : i32
    %62 = vector.broadcast %c18_i32 : i32 to vector<8x108xi32>
    %63 = arith.cmpi sge, %61, %62 : vector<8x108xi32>
    %c36_i32 = arith.constant 36 : i32
    %64 = vector.broadcast %c36_i32 : i32 to vector<8x108xi32>
    %65 = arith.cmpi slt, %61, %64 : vector<8x108xi32>
    %66 = arith.andi %63, %65 : vector<8x108xi1>
    %c0_39 = arith.constant 0 : index
    %c0_40 = arith.constant 0 : index
    %67 = vector.load %arg7[%c0_39, %c0_40] : memref<1x108xf32, #tpu.memory_space<vmem>>, vector<1x108xf32>
    %c0_41 = arith.constant 0 : index
    %c0_42 = arith.constant 0 : index
    %68 = vector.load %arg8[%c0_41, %c0_42] : memref<1x108xf32, #tpu.memory_space<vmem>>, vector<1x108xf32>
    %69 = vector.broadcast %67 : vector<1x108xf32> to vector<8x108xf32>
    %70 = arith.subf %69, %60 : vector<8x108xf32>
    %cst_43 = arith.constant 0.000000e+00 : f32
    %71 = vector.broadcast %cst_43 : f32 to vector<8x108xf32>
    %72 = arith.maximumf %70, %71 : vector<8x108xf32>
    %73 = vector.broadcast %cst_43 : f32 to vector<8x108xf32>
    %74 = arith.subf %70, %73 : vector<8x108xf32>
    %75 = arith.cmpf one, %74, %74 : vector<8x108xf32>
    %76 = vector.broadcast %cst_43 : f32 to vector<8x108xf32>
    %77 = arith.addf %70, %76 : vector<8x108xf32>
    %78 = math.absf %74 : vector<8x108xf32>
    %cst_44 = arith.constant 0.000000e+00 : f32
    %79 = vector.broadcast %cst_44 : f32 to vector<8x108xf32>
    %80 = arith.subf %79, %78 : vector<8x108xf32>
    %81 = math.exp %80 : vector<8x108xf32>
    %82 = math.log1p %81 : vector<8x108xf32>
    %83 = arith.addf %72, %82 : vector<8x108xf32>
    %84 = arith.select %75, %77, %83 : vector<8x108xi1>, vector<8x108xf32>
    %85 = vector.broadcast %67 : vector<1x108xf32> to vector<8x108xf32>
    %86 = arith.subf %85, %84 : vector<8x108xf32>
    %87 = vector.broadcast %68 : vector<1x108xf32> to vector<8x108xf32>
    %88 = arith.subf %86, %87 : vector<8x108xf32>
    %cst_45 = arith.constant 0.000000e+00 : f32
    %89 = vector.broadcast %cst_45 : f32 to vector<8x108xf32>
    %90 = arith.maximumf %88, %89 : vector<8x108xf32>
    %91 = vector.broadcast %cst_45 : f32 to vector<8x108xf32>
    %92 = arith.subf %88, %91 : vector<8x108xf32>
    %93 = arith.cmpf one, %92, %92 : vector<8x108xf32>
    %94 = vector.broadcast %cst_45 : f32 to vector<8x108xf32>
    %95 = arith.addf %88, %94 : vector<8x108xf32>
    %96 = math.absf %92 : vector<8x108xf32>
    %cst_46 = arith.constant 0.000000e+00 : f32
    %97 = vector.broadcast %cst_46 : f32 to vector<8x108xf32>
    %98 = arith.subf %97, %96 : vector<8x108xf32>
    %99 = math.exp %98 : vector<8x108xf32>
    %100 = math.log1p %99 : vector<8x108xf32>
    %101 = arith.addf %90, %100 : vector<8x108xf32>
    %102 = arith.select %93, %95, %101 : vector<8x108xi1>, vector<8x108xf32>
    %103 = vector.broadcast %68 : vector<1x108xf32> to vector<8x108xf32>
    %104 = arith.addf %103, %102 : vector<8x108xf32>
    %105 = math.exp %104 : vector<8x108xf32>
    %106 = arith.select %66, %105, %60 : vector<8x108xi1>, vector<8x108xf32>
    %c0_47 = arith.constant 0 : index
    %c0_48 = arith.constant 0 : index
    %c0_49 = arith.constant 0 : index
    %107 = vector.load %arg9[%c0_47, %c0_48, %c0_49] : memref<1x8x108xf32, #tpu.memory_space<vmem>>, vector<1x8x108xf32>
    %108 = vector.shape_cast %107 : vector<1x8x108xf32> to vector<8x108xf32>
    %109 = vector.shape_cast %106 : vector<8x108xf32> to vector<1x8x108xf32>
    tpu.vector_store %arg9[%c0_47, %c0_48, %c0_49], %109 {strides = array<i32>} : memref<1x8x108xf32, #tpu.memory_space<vmem>>, vector<1x8x108xf32>,
    return
  }
  func.func @transform_0(%arg0: i32, %arg1: i32) -> (i32, i32, i32) {
    %c0_i32 = arith.constant 0 : i32
    %c0_i32_0 = arith.constant 0 : i32
    return %arg0, %arg1, %c0_i32 : i32, i32, i32
  }
  func.func @transform_1(%arg0: i32, %arg1: i32) -> (i32, i32, i32) {
    %c0_i32 = arith.constant 0 : i32
    %c0_i32_0 = arith.constant 0 : i32
    %c0_i32_1 = arith.constant 0 : i32
    return %arg0, %c0_i32, %c0_i32_0 : i32, i32, i32
  }
  func.func @transform_2(%arg0: i32, %arg1: i32) -> (i32, i32, i32, i32) {
    %c0_i32 = arith.constant 0 : i32
    %c0_i32_0 = arith.constant 0 : i32
    %c0_i32_1 = arith.constant 0 : i32
    %c0_i32_2 = arith.constant 0 : i32
    return %arg0, %c0_i32, %c0_i32_0, %c0_i32_1 : i32, i32, i32, i32
  }
  func.func @transform_3(%arg0: i32, %arg1: i32) -> (i32, i32, i32) {
    %c0_i32 = arith.constant 0 : i32
    %c0_i32_0 = arith.constant 0 : i32
    %c0_i32_1 = arith.constant 0 : i32
    return %arg0, %c0_i32, %c0_i32_0 : i32, i32, i32
  }
  func.func @transform_4(%arg0: i32, %arg1: i32) -> (i32, i32, i32) {
    %c0_i32 = arith.constant 0 : i32
    %c0_i32_0 = arith.constant 0 : i32
    %c0_i32_1 = arith.constant 0 : i32
    return %arg0, %c0_i32, %c0_i32_0 : i32, i32, i32
  }
  func.func @transform_5(%arg0: i32, %arg1: i32) -> (i32, i32) {
    %c0_i32 = arith.constant 0 : i32
    %c0_i32_0 = arith.constant 0 : i32
    %c0_i32_1 = arith.constant 0 : i32
    return %c0_i32, %c0_i32_0 : i32, i32
  }
  func.func @transform_6(%arg0: i32, %arg1: i32) -> (i32, i32) {
    %c0_i32 = arith.constant 0 : i32
    %c0_i32_0 = arith.constant 0 : i32
    %c0_i32_1 = arith.constant 0 : i32
    return %c0_i32, %c0_i32_0 : i32, i32
  }
  func.func @transform_7(%arg0: i32, %arg1: i32) -> (i32, i32, i32) {
    %c0_i32 = arith.constant 0 : i32
    %c0_i32_0 = arith.constant 0 : i32
    return %arg0, %arg1, %c0_i32 : i32, i32, i32
  }
}

</mosaic_0001>

<llo_original>
// kernel: ensemble_model_forward.1
$region0: #{ensemble_model_forward.1}
  #allocation0 [shape = 'u32[]', space=smem, size = 0x4, offset = 0x4, fixed_abs, tag = 'smem constant byte address 0x4 - core index']
  #allocation1 [shape = 'u32[144,128]{1,0:T(1,128)}', space=vmem, size = 0x12000, scoped, tag = 'internal scratch']
  %s0 = inlined_call_operand.vmem [shape: f32[4,8,40], index: 0, kind: input, shape index: {}]
  %s1 = inlined_call_operand.vmem [shape: f32[4,40,64], index: 1, kind: input, shape index: {}]
  %s2 = inlined_call_operand.vmem [shape: f32[4,3,64,64], index: 2, kind: input, shape index: {}]
  %s3 = inlined_call_operand.vmem [shape: f32[4,64,108], index: 3, kind: input, shape index: {}]
  %s4 = inlined_call_operand.vmem [shape: f32[4,5,108], index: 4, kind: input, shape index: {}]
  %s5 = inlined_call_operand.vmem [shape: f32[1,108], index: 5, kind: input, shape index: {}]
  %s6 = inlined_call_operand.vmem [shape: f32[1,108], index: 6, kind: input, shape index: {}]
  %s7 = inlined_call_operand.vmem [shape: f32[4,8,108], index: 7, kind: output, shape index: {}]
  %s8 = sld [smem:[#allocation0]]
  $region61: #{ensemble_model_forward.1} parent=0
    _
  %s10 = ssub.s32 1, %s8
  %s11 = scalar_select 0, %s10, %s8
  loop: start=0, step=1, limit=6
  $region2: #{ensemble_model_forward.1} parent=0 // loop_pre_header
    _
  $region3: #{ensemble_model_forward.1} parent=0 // loop_header
    %s13 = sphi 0, %s17
    %p14 = scmp.ge.s32.totalorder %s13, 6
    %s20 = sphi 0, %s32
    %s21 = sphi 0, %s28
    %s22 = sphi 0, %s20
    %s23 = sphi 0, %s21
    %s24 = sphi 0, %s22
    %s25 = sphi 0, %s23
    %s37 = sphi 0, %s39
    %s40 = sphi 0, %s37
    %s41 = sphi 0, %s40
    %s57 = sphi 0, %s41
    %s63 = sphi 0, %s65
    %s66 = sphi 0, %s63
    %s67 = sphi 0, %s66
    %s83 = sphi 0, %s67
    %s89 = sphi 0, %s91
    %s92 = sphi 0, %s89
    %s93 = sphi 0, %s92
    %s109 = sphi 0, %s93
    %s115 = sphi 0, %s117
    %s118 = sphi 0, %s115
    %s119 = sphi 0, %s118
    %s135 = sphi 0, %s119
    %s141 = sphi 0, %s143
    %s144 = sphi 0, %s141
    %s145 = sphi 0, %s144
    %s161 = sphi 0, %s145
    %s165 = sphi 0, %s165
    %s167 = sphi 0, %s165
    %s168 = sphi 0, %s167
    %s182 = sphi 0, %s168
    %s186 = sphi 0, %s186
    %s188 = sphi 0, %s186
    %s189 = sphi 0, %s188
    %s203 = sphi 0, %s189
    %s211 = sphi 0, %s213
    %s214 = sphi 0, %s211
    %s215 = sphi 0, %s214
    %s231 = sphi 0, %s215
  $region4: #{ensemble_model_forward.1} parent=0 // loop_header_branch
    %16 = sbr.rel (%p14) target = $region8
  $region5: #{ensemble_model_forward.1} parent=0 // loop_body
    %s18 = ssub.s32 %s13, 1
    %s19 = ssub.s32 %s13, 2
    %s26 = sadd.s32 1, %s21
    %p27 = scmp.ge.s32.totalorder %s26, 1
    %s28 = scalar_select %p27, 0, %s26
    %s29 = sadd.s32 1, %s20
    %s30 = scalar_select %p27, %s29, %s20
    %p31 = scmp.ge.s32.totalorder %s30, 4
    %s32 = scalar_select %p31, 0, %s30
    %s33 = ssub.s32 %s20, %s32
    %s34 = ssub.s32 %s21, %s28
    %s35 = sor.u32 %s33, %s34
    %p36 = scmp.eq.s32.totalorder %s35, 0
    %s38 = sadd.s32 %s37, 1
    %s39 = scalar_select %p36, %s37, %s38
    %p42 = pneg %p36
    %p43 = scmp.eq.s32.totalorder %s13, 3
    %p44 = por %p42, %p43
    %p45 = scmp.ne.s32.totalorder %s37, %s40
    %p46 = scmp.eq.s32.totalorder %s13, 0
    %p47 = por %p45, %p46
    %p48 = scmp.ne.s32.totalorder %s37, %s40
    %p49 = scmp.eq.s32.totalorder %s18, 3
    %p50 = por %p48, %p49
    %p51 = scmp.ne.s32.totalorder %s40, %s41
    %p52 = scmp.eq.s32.totalorder %s18, 0
    %p53 = por %p51, %p52
    %p54 = scmp.ne.s32.totalorder %s40, %s41
    %p55 = scmp.eq.s32.totalorder %s19, 3
    %p56 = por %p54, %p55
    %p58 = scmp.ne.s32.totalorder %s41, %s57
    %p59 = scmp.eq.s32.totalorder %s19, 0
    %p60 = por %p58, %p59
    %s61 = ssub.s32 %s20, %s32
    %p62 = scmp.eq.s32.totalorder %s61, 0
    %s64 = sadd.s32 %s63, 1
    %s65 = scalar_select %p62, %s63, %s64
    %p68 = pneg %p62
    %p69 = scmp.eq.s32.totalorder %s13, 3
    %p70 = por %p68, %p69
    %p71 = scmp.ne.s32.totalorder %s63, %s66
    %p72 = scmp.eq.s32.totalorder %s13, 0
    %p73 = por %p71, %p72
    %p74 = scmp.ne.s32.totalorder %s63, %s66
    %p75 = scmp.eq.s32.totalorder %s18, 3
    %p76 = por %p74, %p75
    %p77 = scmp.ne.s32.totalorder %s66, %s67
    %p78 = scmp.eq.s32.totalorder %s18, 0
    %p79 = por %p77, %p78
    %p80 = scmp.ne.s32.totalorder %s66, %s67
    %p81 = scmp.eq.s32.totalorder %s19, 3
    %p82 = por %p80, %p81
    %p84 = scmp.ne.s32.totalorder %s67, %s83
    %p85 = scmp.eq.s32.totalorder %s19, 0
    %p86 = por %p84, %p85
    %s87 = ssub.s32 %s20, %s32
    %p88 = scmp.eq.s32.totalorder %s87, 0
    %s90 = sadd.s32 %s89, 1
    %s91 = scalar_select %p88, %s89, %s90
    %p94 = pneg %p88
    %p95 = scmp.eq.s32.totalorder %s13, 3
    %p96 = por %p94, %p95
    %p97 = scmp.ne.s32.totalorder %s89, %s92
    %p98 = scmp.eq.s32.totalorder %s13, 0
    %p99 = por %p97, %p98
    %p100 = scmp.ne.s32.totalorder %s89, %s92
    %p101 = scmp.eq.s32.totalorder %s18, 3
    %p102 = por %p100, %p101
    %p103 = scmp.ne.s32.totalorder %s92, %s93
    %p104 = scmp.eq.s32.totalorder %s18, 0
    %p105 = por %p103, %p104
    %p106 = scmp.ne.s32.totalorder %s92, %s93
    %p107 = scmp.eq.s32.totalorder %s19, 3
    %p108 = por %p106, %p107
    %p110 = scmp.ne.s32.totalorder %s93, %s109
    %p111 = scmp.eq.s32.totalorder %s19, 0
    %p112 = por %p110, %p111
    %s113 = ssub.s32 %s20, %s32
    %p114 = scmp.eq.s32.totalorder %s113, 0
    %s116 = sadd.s32 %s115, 1
    %s117 = scalar_select %p114, %s115, %s116
    %p120 = pneg %p114
    %p121 = scmp.eq.s32.totalorder %s13, 3
    %p122 = por %p120, %p121
    %p123 = scmp.ne.s32.totalorder %s115, %s118
    %p124 = scmp.eq.s32.totalorder %s13, 0
    %p125 = por %p123, %p124
    %p126 = scmp.ne.s32.totalorder %s115, %s118
    %p127 = scmp.eq.s32.totalorder %s18, 3
    %p128 = por %p126, %p127
    %p129 = scmp.ne.s32.totalorder %s118, %s119
    %p130 = scmp.eq.s32.totalorder %s18, 0
    %p131 = por %p129, %p130
    %p132 = scmp.ne.s32.totalorder %s118, %s119
    %p133 = scmp.eq.s32.totalorder %s19, 3
    %p134 = por %p132, %p133
    %p136 = scmp.ne.s32.totalorder %s119, %s135
    %p137 = scmp.eq.s32.totalorder %s19, 0
    %p138 = por %p136, %p137
    %s139 = ssub.s32 %s20, %s32
    %p140 = scmp.eq.s32.totalorder %s139, 0
    %s142 = sadd.s32 %s141, 1
    %s143 = scalar_select %p140, %s141, %s142
    %p146 = pneg %p140
    %p147 = scmp.eq.s32.totalorder %s13, 3
    %p148 = por %p146, %p147
    %p149 = scmp.ne.s32.totalorder %s141, %s144
    %p150 = scmp.eq.s32.totalorder %s13, 0
    %p151 = por %p149, %p150
    %p152 = scmp.ne.s32.totalorder %s141, %s144
    %p153 = scmp.eq.s32.totalorder %s18, 3
    %p154 = por %p152, %p153
    %p155 = scmp.ne.s32.totalorder %s144, %s145
    %p156 = scmp.eq.s32.totalorder %s18, 0
    %p157 = por %p155, %p156
    %p158 = scmp.ne.s32.totalorder %s144, %s145
    %p159 = scmp.eq.s32.totalorder %s19, 3
    %p160 = por %p158, %p159
    %p162 = scmp.ne.s32.totalorder %s145, %s161
    %p163 = scmp.eq.s32.totalorder %s19, 0
    %p164 = por %p162, %p163
    %s166 = sadd.s32 %s165, 1
    %p169 = scmp.eq.s32.totalorder %s13, 3
    %p170 = scmp.ne.s32.totalorder %s165, %s167
    %p171 = scmp.eq.s32.totalorder %s13, 0
    %p172 = por %p170, %p171
    %p173 = scmp.ne.s32.totalorder %s165, %s167
    %p174 = scmp.eq.s32.totalorder %s18, 3
    %p175 = por %p173, %p174
    %p176 = scmp.ne.s32.totalorder %s167, %s168
    %p177 = scmp.eq.s32.totalorder %s18, 0
    %p178 = por %p176, %p177
    %p179 = scmp.ne.s32.totalorder %s167, %s168
    %p180 = scmp.eq.s32.totalorder %s19, 3
    %p181 = por %p179, %p180
    %p183 = scmp.ne.s32.totalorder %s168, %s182
    %p184 = scmp.eq.s32.totalorder %s19, 0
    %p185 = por %p183, %p184
    %s187 = sadd.s32 %s186, 1
    %p190 = scmp.eq.s32.totalorder %s13, 3
    %p191 = scmp.ne.s32.totalorder %s186, %s188
    %p192 = scmp.eq.s32.totalorder %s13, 0
    %p193 = por %p191, %p192
    %p194 = scmp.ne.s32.totalorder %s186, %s188
    %p195 = scmp.eq.s32.totalorder %s18, 3
    %p196 = por %p194, %p195
    %p197 = scmp.ne.s32.totalorder %s188, %s189
    %p198 = scmp.eq.s32.totalorder %s18, 0
    %p199 = por %p197, %p198
    %p200 = scmp.ne.s32.totalorder %s188, %s189
    %p201 = scmp.eq.s32.totalorder %s19, 3
    %p202 = por %p200, %p201
    %p204 = scmp.ne.s32.totalorder %s189, %s203
    %p205 = scmp.eq.s32.totalorder %s19, 0
    %p206 = por %p204, %p205
    %s207 = ssub.s32 %s20, %s32
    %s208 = ssub.s32 %s21, %s28
    %s209 = sor.u32 %s207, %s208
    %p210 = scmp.eq.s32.totalorder %s209, 0
    %s212 = sadd.s32 %s211, 1
    %s213 = scalar_select %p210, %s211, %s212
    %p216 = pneg %p210
    %p217 = scmp.eq.s32.totalorder %s13, 3
    %p218 = por %p216, %p217
    %p219 = scmp.ne.s32.totalorder %s211, %s214
    %p220 = scmp.eq.s32.totalorder %s13, 0
    %p221 = por %p219, %p220
    %p222 = scmp.ne.s32.totalorder %s211, %s214
    %p223 = scmp.eq.s32.totalorder %s18, 3
    %p224 = por %p222, %p223
    %p225 = scmp.ne.s32.totalorder %s214, %s215
    %p226 = scmp.eq.s32.totalorder %s18, 0
    %p227 = por %p225, %p226
    %p228 = scmp.ne.s32.totalorder %s214, %s215
    %p229 = scmp.eq.s32.totalorder %s19, 3
    %p230 = por %p228, %p229
    %p232 = scmp.ne.s32.totalorder %s215, %s231
    %p233 = scmp.eq.s32.totalorder %s19, 0
    %p234 = por %p232, %p233
    %p235 = scmp.le.s32.totalorder 1, %s13
    %p236 = scmp.lt.s32.totalorder %s13, 5
    %p237 = pnand %p235, %p236
    %p238 = pneg %p237
    // Predicated region
    $region9: #{ensemble_model_forward.1} parent=5 // pred_check
      _
    $region10: #{ensemble_model_forward.1} parent=5 // pred_check_branch
      %240 = sbr.rel (%p237) target = $region12
    $region11: #{ensemble_model_forward.1} parent=5 // pred_region
      %s241 = ssub.s32 %s13, 1
      // Predicated region
      $region13: #{ensemble_model_forward.1} parent=11 // pred_check
        %p242 = pneg %p178
      $region14: #{ensemble_model_forward.1} parent=11 // pred_check_branch
        %244 = sbr.rel (%p242) target = $region16
      $region15: #{ensemble_model_forward.1} parent=11 // pred_region
        _
      $region16: #{ensemble_model_forward.1} parent=11 // pred_fallthru
        _
      // Predicated region
      $region17: #{ensemble_model_forward.1} parent=11 // pred_check
        %p245 = pneg %p199
      $region18: #{ensemble_model_forward.1} parent=11 // pred_check_branch
        %247 = sbr.rel (%p245) target = $region20
      $region19: #{ensemble_model_forward.1} parent=11 // pred_region
        _
      $region20: #{ensemble_model_forward.1} parent=11 // pred_fallthru
        _
    $region12: #{ensemble_model_forward.1} parent=5 // pred_fallthru
      _
    %p248 = scmp.lt.s32.totalorder %s13, 4
    // Predicated region
    $region21: #{ensemble_model_forward.1} parent=5 // pred_check
      %p249 = pneg %p248
    $region22: #{ensemble_model_forward.1} parent=5 // pred_check_branch
      %251 = sbr.rel (%p249) target = $region24
    $region23: #{ensemble_model_forward.1} parent=5 // pred_region
      // Predicated region
      $region25: #{ensemble_model_forward.1} parent=23 // pred_check
        %p252 = pneg %p47
      $region26: #{ensemble_model_forward.1} parent=23 // pred_check_branch
        %254 = sbr.rel (%p252) target = $region28
      $region27: #{ensemble_model_forward.1} parent=23 // pred_region
        %p255 = scmp.lt.s32.totalorder %s20, 3
        %s256 = scalar_select %p255, %s20, 3
        %p257 = scmp.lt.s32.totalorder %s21, 0
        %s258 = scalar_select %p257, %s21, 0
        %s259 = sadd.s32 %s258, %s256
        %s260 = smul.addr %s259, 8
        %s261 = scalar_lea.vmem %s0, %s260
      $region28: #{ensemble_model_forward.1} parent=23 // pred_fallthru
        _
      // Predicated region
      $region29: #{ensemble_model_forward.1} parent=23 // pred_check
        %p262 = pneg %p73
      $region30: #{ensemble_model_forward.1} parent=23 // pred_check_branch
        %264 = sbr.rel (%p262) target = $region32
      $region31: #{ensemble_model_forward.1} parent=23 // pred_region
        %p265 = scmp.lt.s32.totalorder %s20, 3
        %s266 = scalar_select %p265, %s20, 3
        %s267 = smul.addr %s266, 5
        %s268 = smul.addr %s267, 8
        %s269 = scalar_lea.vmem %s1, %s268
      $region32: #{ensemble_model_forward.1} parent=23 // pred_fallthru
        _
      // Predicated region
      $region33: #{ensemble_model_forward.1} parent=23 // pred_check
        %p270 = pneg %p99
      $region34: #{ensemble_model_forward.1} parent=23 // pred_check_branch
        %272 = sbr.rel (%p270) target = $region36
      $region35: #{ensemble_model_forward.1} parent=23 // pred_region
        %p273 = scmp.lt.s32.totalorder %s20, 3
        %s274 = scalar_select %p273, %s20, 3
        %s275 = smul.addr %s274, 24
        %s276 = smul.addr %s275, 8
        %s277 = scalar_lea.vmem %s2, %s276
      $region36: #{ensemble_model_forward.1} parent=23 // pred_fallthru
        _
      // Predicated region
      $region37: #{ensemble_model_forward.1} parent=23 // pred_check
        %p278 = pneg %p125
      $region38: #{ensemble_model_forward.1} parent=23 // pred_check_branch
        %280 = sbr.rel (%p278) target = $region40
      $region39: #{ensemble_model_forward.1} parent=23 // pred_region
        %p281 = scmp.lt.s32.totalorder %s20, 3
        %s282 = scalar_select %p281, %s20, 3
        %s283 = smul.addr %s282, 8
        %s284 = smul.addr %s283, 8
        %s285 = scalar_lea.vmem %s3, %s284
      $region40: #{ensemble_model_forward.1} parent=23 // pred_fallthru
        _
      // Predicated region
      $region41: #{ensemble_model_forward.1} parent=23 // pred_check
        %p286 = pneg %p151
      $region42: #{ensemble_model_forward.1} parent=23 // pred_check_branch
        %288 = sbr.rel (%p286) target = $region44
      $region43: #{ensemble_model_forward.1} parent=23 // pred_region
        %p289 = scmp.lt.s32.totalorder %s20, 3
        %s290 = scalar_select %p289, %s20, 3
        %s291 = smul.addr %s290, 8
        %s292 = scalar_lea.vmem %s4, %s291
      $region44: #{ensemble_model_forward.1} parent=23 // pred_fallthru
        _
    $region24: #{ensemble_model_forward.1} parent=5 // pred_fallthru
      _
    %p293 = scmp.le.s32.totalorder 1, %s13
    %p294 = scmp.lt.s32.totalorder %s13, 5
    %p295 = pnand %p293, %p294
    %p296 = pneg %p295
    // Predicated region
    $region45: #{ensemble_model_forward.1} parent=5 // pred_check
      _
    $region46: #{ensemble_model_forward.1} parent=5 // pred_check_branch
      %298 = sbr.rel (%p295) target = $region48
    $region47: #{ensemble_model_forward.1} parent=5 // pred_region
      %s299 = ssub.s32 %s13, 1
      %p300 = scmp.lt.s32.totalorder %s22, 3
      %s301 = scalar_select %p300, %s22, 3
      %p302 = scmp.lt.s32.totalorder %s23, 0
      %s303 = scalar_select %p302, %s23, 0
      %s304 = sadd.s32 %s303, %s301
      %s305 = smul.addr %s304, 8
      %s306 = scalar_lea.vmem %s0, %s305
      %p307 = pneg %p53
      %p308 = pneg %p50
      %p309 = scmp.lt.s32.totalorder %s22, 3
      %s310 = scalar_select %p309, %s22, 3
      %s311 = smul.addr %s310, 5
      %s312 = smul.addr %s311, 8
      %s313 = scalar_lea.vmem %s1, %s312
      %p314 = pneg %p79
      %p315 = pneg %p76
      %p316 = scmp.lt.s32.totalorder %s22, 3
      %s317 = scalar_select %p316, %s22, 3
      %s318 = smul.addr %s317, 24
      %s319 = smul.addr %s318, 8
      %s320 = scalar_lea.vmem %s2, %s319
      %p321 = pneg %p105
      %p322 = pneg %p102
      %p323 = scmp.lt.s32.totalorder %s22, 3
      %s324 = scalar_select %p323, %s22, 3
      %s325 = smul.addr %s324, 8
      %s326 = smul.addr %s325, 8
      %s327 = scalar_lea.vmem %s3, %s326
      %p328 = pneg %p131
      %p329 = pneg %p128
      %p330 = scmp.lt.s32.totalorder %s22, 3
      %s331 = scalar_select %p330, %s22, 3
      %s332 = smul.addr %s331, 8
      %s333 = scalar_lea.vmem %s4, %s332
      %p334 = pneg %p157
      %p335 = pneg %p154
      %p336 = pneg %p178
      %p337 = pneg %p175
      %p338 = pneg %p199
      %p339 = pneg %p196
      %p340 = pneg %p227
      %p341 = pneg %p224
      %p342 = scmp.lt.s32.totalorder %s22, 3
      %s343 = scalar_select %p342, %s22, 3
      %p344 = scmp.lt.s32.totalorder %s23, 0
      %s345 = scalar_select %p344, %s23, 0
      %s346 = sadd.s32 %s345, %s343
      %s347 = smul.addr %s346, 8
      %s348 = scalar_lea.vmem %s7, %s347
      %p349 = scmp.lt.s32.totalorder %s22, 3
      %s350 = scalar_select %p349, %s22, 3
      %p351 = scmp.lt.s32.totalorder %s23, 0
      %s352 = scalar_select %p351, %s23, 0
      %s353 = sadd.s32 %s352, %s350
      %s354 = smul.addr %s353, 8
      %s355 = scalar_lea.vmem %s0, %s354
      %p356 = scmp.lt.s32.totalorder %s22, 3
      %s357 = scalar_select %p356, %s22, 3
      %s358 = smul.addr %s357, 5
      %s359 = smul.addr %s358, 8
      %s360 = scalar_lea.vmem %s1, %s359
      %p361 = scmp.lt.s32.totalorder %s22, 3
      %s362 = scalar_select %p361, %s22, 3
      %s363 = smul.addr %s362, 24
      %s364 = smul.addr %s363, 8
      %s365 = scalar_lea.vmem %s2, %s364
      %p366 = scmp.lt.s32.totalorder %s22, 3
      %s367 = scalar_select %p366, %s22, 3
      %s368 = smul.addr %s367, 8
      %s369 = smul.addr %s368, 8
      %s370 = scalar_lea.vmem %s3, %s369
      %p371 = scmp.lt.s32.totalorder %s22, 3
      %s372 = scalar_select %p371, %s22, 3
      %s373 = smul.addr %s372, 8
      %s374 = scalar_lea.vmem %s4, %s373
      %p375 = scmp.lt.s32.totalorder %s22, 3
      %s376 = scalar_select %p375, %s22, 3
      %p377 = scmp.lt.s32.totalorder %s23, 0
      %s378 = scalar_select %p377, %s23, 0
      %s379 = sadd.s32 %s378, %s376
      %s380 = smul.addr %s379, 8
      %s381 = scalar_lea.vmem %s7, %s380
      %v382 = vld [vmem:[%s355] sm:$0xff]
      %v383 = vld [vmem:[%s360] sm:$0xff]
      %v384 = vld [vmem:[%s360 + $0x8] sm:$0xff]
      %v385 = vld [vmem:[%s360 + $0x10] sm:$0xff]
      %v386 = vld [vmem:[%s360 + $0x18] sm:$0xff]
      %v387 = vld [vmem:[%s360 + $0x20] sm:$0xff]
      %v388 = vld [vmem:[%s374] sm:$0x1]
      %v389 = vlaneseq
      %v390 = vshrl.u32 %v389, 7
      %v391 = vsub.s32 0, %v390
      %v392 = vrot.slane %v388, %v391
      %vm393 = vcmask 326656
      %v395 = vsel %vm393, %v382, 0
      %397 = vmatprep.subr.mxu0 0.0
      %398 = vmatpush1.msra.mxu0 0.0
      %399 = vmatprep.subr.mxu0 0.0
      %400 = vmatpush1.msra.mxu0 0.0
      %401 = vmatprep.subr.mxu0 0.0
      %402 = vmatpush1.msra.mxu0 0.0
      %403 = vmatprep.subr.mxu0 0.0
      %404 = vmatpush1.msra.mxu0 0.0
      %405 = vmatprep.subr.mxu0 0.0
      %406 = vmatpush1.msra.mxu0 0.0
      %407 = vmatprep.subr.mxu0 0.0
      %408 = vmatpush1.msra.mxu0 0.0
      %409 = vmatprep.subr.mxu0 0.0
      %410 = vmatpush1.msra.mxu0 0.0
      %411 = vmatprep.subr.mxu0 0.0
      %412 = vmatpush1.msra.mxu0 0.0
      %413 = vmatprep.subr.mxu0 0.0
      %414 = vmatpush1.msra.mxu0 0.0
      %415 = vmatprep.subr.mxu0 0.0
      %416 = vmatpush1.msra.mxu0 0.0
      %417 = vmatprep.subr.mxu0 0.0
      %418 = vmatpush1.msra.mxu0 0.0
      %419 = vmatprep.subr.mxu0 0.0
      %420 = vmatpush1.msra.mxu0 %v387
      %421 = vmatprep.subr.mxu0 0.0
      %422 = vmatpush1.msra.mxu0 %v386
      %423 = vmatprep.subr.mxu0 0.0
      %424 = vmatpush1.msra.mxu0 %v385
      %425 = vmatprep.subr.mxu0 0.0
      %426 = vmatpush1.msra.mxu0 %v384
      %427 = vmatprep.subr.mxu0 0.0
      %428 = vmatpush1.msra.mxu0 %v383
      %429 = vmatprep.subr.mxu0 0.0
      %430 = vmatpush2.msra.mxu0 0.0
      %431 = vmatprep.subr.mxu0 0.0
      %432 = vmatpush2.msra.mxu0 0.0
      %433 = vmatprep.subr.mxu0 0.0
      %434 = vmatpush2.msra.mxu0 0.0
      %435 = vmatprep.subr.mxu0 0.0
      %436 = vmatpush2.msra.mxu0 0.0
      %437 = vmatprep.subr.mxu0 0.0
      %438 = vmatpush2.msra.mxu0 0.0
      %439 = vmatprep.subr.mxu0 0.0
      %440 = vmatpush2.msra.mxu0 0.0
      %441 = vmatprep.subr.mxu0 0.0
      %442 = vmatpush2.msra.mxu0 0.0
      %443 = vmatprep.subr.mxu0 0.0
      %444 = vmatpush2.msra.mxu0 0.0
      %445 = vmatprep.subr.mxu0 0.0
      %446 = vmatpush2.msra.mxu0 0.0
      %447 = vmatprep.subr.mxu0 0.0
      %448 = vmatpush2.msra.mxu0 0.0
      %449 = vmatprep.subr.mxu0 0.0
      %450 = vmatpush2.msra.mxu0 0.0
      %451 = vmatprep.subr.mxu0 0.0
      %452 = vmatpush2.msra.mxu0 0.0
      %453 = vmatprep.subr.mxu0 0.0
      %454 = vmatpush2.msra.mxu0 0.0
      %455 = vmatprep.subr.mxu0 0.0
      %456 = vmatpush2.msra.mxu0 0.0
      %457 = vmatprep.subr.mxu0 0.0
      %458 = vmatpush2.msra.mxu0 0.0
      %459 = vmatprep.subr.mxu0 0.0
      %460 = vmatpush2.msra.mxu0 0.0
      %461 = vmatprep.mubr.f32.mxu0 0.0
      %462 = vmatmul.mubr.f32.gmra.mxu0 %v395
      %v463 = vpop.f32.mrf.mxu0
      %v464 = vadd.f32 %v392, %v463
      %v465 = vpop.f32.mrf.mxu0
      %466 = vdwg.mxu0
      %v467 = vxor.u32 %v464, 2147483648
      %v468 = vmul.f32 %v467, 1.442695
      %v469 = vpow.pop %v468
      %v470 = vadd.f32 %v469, 1.0
      %v471 = vrcp.pop %v470
      %v472 = vmul.f32 1.0, %v471
      %v473 = vmul.f32 %v464, %v472
      %v474 = vld [vmem:[%s365] sm:$0xff]
      %v475 = vld [vmem:[%s365 + $0x8] sm:$0xff]
      %v476 = vld [vmem:[%s365 + $0x10] sm:$0xff]
      %v477 = vld [vmem:[%s365 + $0x18] sm:$0xff]
      %v478 = vld [vmem:[%s365 + $0x20] sm:$0xff]
      %v479 = vld [vmem:[%s365 + $0x28] sm:$0xff]
      %v480 = vld [vmem:[%s365 + $0x30] sm:$0xff]
      %v481 = vld [vmem:[%s365 + $0x38] sm:$0xff]
      %v482 = vld [vmem:[%s374 + $0x1] sm:$0x1]
      %v483 = vlaneseq
      %v484 = vshrl.u32 %v483, 7
      %v485 = vsub.s32 0, %v484
      %v486 = vrot.slane %v482, %v485
      %vm487 = vcmask 523264
      %v489 = vsel %vm487, %v473, 0
      %491 = vmatprep.subr.mxu0 0.0
      %492 = vmatpush1.msra.mxu0 0.0
      %493 = vmatprep.subr.mxu0 0.0
      %494 = vmatpush1.msra.mxu0 0.0
      %495 = vmatprep.subr.mxu0 0.0
      %496 = vmatpush1.msra.mxu0 0.0
      %497 = vmatprep.subr.mxu0 0.0
      %498 = vmatpush1.msra.mxu0 0.0
      %499 = vmatprep.subr.mxu0 0.0
      %500 = vmatpush1.msra.mxu0 0.0
      %501 = vmatprep.subr.mxu0 0.0
      %502 = vmatpush1.msra.mxu0 0.0
      %503 = vmatprep.subr.mxu0 0.0
      %504 = vmatpush1.msra.mxu0 0.0
      %505 = vmatprep.subr.mxu0 0.0
      %506 = vmatpush1.msra.mxu0 0.0
      %507 = vmatprep.subr.mxu0 0.0
      %508 = vmatpush1.msra.mxu0 %v481
      %509 = vmatprep.subr.mxu0 0.0
      %510 = vmatpush1.msra.mxu0 %v480
      %511 = vmatprep.subr.mxu0 0.0
      %512 = vmatpush1.msra.mxu0 %v479
      %513 = vmatprep.subr.mxu0 0.0
      %514 = vmatpush1.msra.mxu0 %v478
      %515 = vmatprep.subr.mxu0 0.0
      %516 = vmatpush1.msra.mxu0 %v477
      %517 = vmatprep.subr.mxu0 0.0
      %518 = vmatpush1.msra.mxu0 %v476
      %519 = vmatprep.subr.mxu0 0.0
      %520 = vmatpush1.msra.mxu0 %v475
      %521 = vmatprep.subr.mxu0 0.0
      %522 = vmatpush1.msra.mxu0 %v474
      %523 = vmatprep.subr.mxu0 0.0
      %524 = vmatpush2.msra.mxu0 0.0
      %525 = vmatprep.subr.mxu0 0.0
      %526 = vmatpush2.msra.mxu0 0.0
      %527 = vmatprep.subr.mxu0 0.0
      %528 = vmatpush2.msra.mxu0 0.0
      %529 = vmatprep.subr.mxu0 0.0
      %530 = vmatpush2.msra.mxu0 0.0
      %531 = vmatprep.subr.mxu0 0.0
      %532 = vmatpush2.msra.mxu0 0.0
      %533 = vmatprep.subr.mxu0 0.0
      %534 = vmatpush2.msra.mxu0 0.0
      %535 = vmatprep.subr.mxu0 0.0
      %536 = vmatpush2.msra.mxu0 0.0
      %537 = vmatprep.subr.mxu0 0.0
      %538 = vmatpush2.msra.mxu0 0.0
      %539 = vmatprep.subr.mxu0 0.0
      %540 = vmatpush2.msra.mxu0 0.0
      %541 = vmatprep.subr.mxu0 0.0
      %542 = vmatpush2.msra.mxu0 0.0
      %543 = vmatprep.subr.mxu0 0.0
      %544 = vmatpush2.msra.mxu0 0.0
      %545 = vmatprep.subr.mxu0 0.0
      %546 = vmatpush2.msra.mxu0 0.0
      %547 = vmatprep.subr.mxu0 0.0
      %548 = vmatpush2.msra.mxu0 0.0
      %549 = vmatprep.subr.mxu0 0.0
      %550 = vmatpush2.msra.mxu0 0.0
      %551 = vmatprep.subr.mxu0 0.0
      %552 = vmatpush2.msra.mxu0 0.0
      %553 = vmatprep.subr.mxu0 0.0
      %554 = vmatpush2.msra.mxu0 0.0
      %555 = vmatprep.mubr.f32.mxu0 0.0
      %556 = vmatmul.mubr.f32.gmra.mxu0 %v489
      %v557 = vpop.f32.mrf.mxu0
      %v558 = vadd.f32 %v486, %v557
      %v559 = vpop.f32.mrf.mxu0
      %560 = vdwg.mxu0
      %v561 = vxor.u32 %v558, 2147483648
      %v562 = vmul.f32 %v561, 1.442695
      %v563 = vpow.pop %v562
      %v564 = vadd.f32 %v563, 1.0
      %v565 = vrcp.pop %v564
      %v566 = vmul.f32 1.0, %v565
      %v567 = vmul.f32 %v558, %v566
      %s568 = scalar_lea.vmem %s365, 64
      %v569 = vld [vmem:[%s568] sm:$0xff]
      %v570 = vld [vmem:[%s568 + $0x8] sm:$0xff]
      %v571 = vld [vmem:[%s568 + $0x10] sm:$0xff]
      %v572 = vld [vmem:[%s568 + $0x18] sm:$0xff]
      %v573 = vld [vmem:[%s568 + $0x20] sm:$0xff]
      %v574 = vld [vmem:[%s568 + $0x28] sm:$0xff]
      %v575 = vld [vmem:[%s568 + $0x30] sm:$0xff]
      %v576 = vld [vmem:[%s568 + $0x38] sm:$0xff]
      %v577 = vld [vmem:[%s374 + $0x2] sm:$0x1]
      %v578 = vlaneseq
      %v579 = vshrl.u32 %v578, 7
      %v580 = vsub.s32 0, %v579
      %v581 = vrot.slane %v577, %v580
      %v583 = vsel %vm487, %v567, 0
      %585 = vmatprep.subr.mxu0 0.0
      %586 = vmatpush1.msra.mxu0 0.0
      %587 = vmatprep.subr.mxu0 0.0
      %588 = vmatpush1.msra.mxu0 0.0
      %589 = vmatprep.subr.mxu0 0.0
      %590 = vmatpush1.msra.mxu0 0.0
      %591 = vmatprep.subr.mxu0 0.0
      %592 = vmatpush1.msra.mxu0 0.0
      %593 = vmatprep.subr.mxu0 0.0
      %594 = vmatpush1.msra.mxu0 0.0
      %595 = vmatprep.subr.mxu0 0.0
      %596 = vmatpush1.msra.mxu0 0.0
      %597 = vmatprep.subr.mxu0 0.0
      %598 = vmatpush1.msra.mxu0 0.0
      %599 = vmatprep.subr.mxu0 0.0
      %600 = vmatpush1.msra.mxu0 0.0
      %601 = vmatprep.subr.mxu0 0.0
      %602 = vmatpush1.msra.mxu0 %v576
      %603 = vmatprep.subr.mxu0 0.0
      %604 = vmatpush1.msra.mxu0 %v575
      %605 = vmatprep.subr.mxu0 0.0
      %606 = vmatpush1.msra.mxu0 %v574
      %607 = vmatprep.subr.mxu0 0.0
      %608 = vmatpush1.msra.mxu0 %v573
      %609 = vmatprep.subr.mxu0 0.0
      %610 = vmatpush1.msra.mxu0 %v572
      %611 = vmatprep.subr.mxu0 0.0
      %612 = vmatpush1.msra.mxu0 %v571
      %613 = vmatprep.subr.mxu0 0.0
      %614 = vmatpush1.msra.mxu0 %v570
      %615 = vmatprep.subr.mxu0 0.0
      %616 = vmatpush1.msra.mxu0 %v569
      %617 = vmatprep.subr.mxu0 0.0
      %618 = vmatpush2.msra.mxu0 0.0
      %619 = vmatprep.subr.mxu0 0.0
      %620 = vmatpush2.msra.mxu0 0.0
      %621 = vmatprep.subr.mxu0 0.0
      %622 = vmatpush2.msra.mxu0 0.0
      %623 = vmatprep.subr.mxu0 0.0
      %624 = vmatpush2.msra.mxu0 0.0
      %625 = vmatprep.subr.mxu0 0.0
      %626 = vmatpush2.msra.mxu0 0.0
      %627 = vmatprep.subr.mxu0 0.0
      %628 = vmatpush2.msra.mxu0 0.0
      %629 = vmatprep.subr.mxu0 0.0
      %630 = vmatpush2.msra.mxu0 0.0
      %631 = vmatprep.subr.mxu0 0.0
      %632 = vmatpush2.msra.mxu0 0.0
      %633 = vmatprep.subr.mxu0 0.0
      %634 = vmatpush2.msra.mxu0 0.0
      %635 = vmatprep.subr.mxu0 0.0
      %636 = vmatpush2.msra.mxu0 0.0
      %637 = vmatprep.subr.mxu0 0.0
      %638 = vmatpush2.msra.mxu0 0.0
      %639 = vmatprep.subr.mxu0 0.0
      %640 = vmatpush2.msra.mxu0 0.0
      %641 = vmatprep.subr.mxu0 0.0
      %642 = vmatpush2.msra.mxu0 0.0
      %643 = vmatprep.subr.mxu0 0.0
      %644 = vmatpush2.msra.mxu0 0.0
      %645 = vmatprep.subr.mxu0 0.0
      %646 = vmatpush2.msra.mxu0 0.0
      %647 = vmatprep.subr.mxu0 0.0
      %648 = vmatpush2.msra.mxu0 0.0
      %649 = vmatprep.mubr.f32.mxu0 0.0
      %650 = vmatmul.mubr.f32.gmra.mxu0 %v583
      %v651 = vpop.f32.mrf.mxu0
      %v652 = vadd.f32 %v581, %v651
      %v653 = vpop.f32.mrf.mxu0
      %654 = vdwg.mxu0
      %v655 = vxor.u32 %v652, 2147483648
      %v656 = vmul.f32 %v655, 1.442695
      %v657 = vpow.pop %v656
      %v658 = vadd.f32 %v657, 1.0
      %v659 = vrcp.pop %v658
      %v660 = vmul.f32 1.0, %v659
      %v661 = vmul.f32 %v652, %v660
      %s662 = scalar_lea.vmem %s365, 128
      %v663 = vld [vmem:[%s662] sm:$0xff]
      %v664 = vld [vmem:[%s662 + $0x8] sm:$0xff]
      %v665 = vld [vmem:[%s662 + $0x10] sm:$0xff]
      %v666 = vld [vmem:[%s662 + $0x18] sm:$0xff]
      %v667 = vld [vmem:[%s662 + $0x20] sm:$0xff]
      %v668 = vld [vmem:[%s662 + $0x28] sm:$0xff]
      %v669 = vld [vmem:[%s662 + $0x30] sm:$0xff]
      %v670 = vld [vmem:[%s662 + $0x38] sm:$0xff]
      %v671 = vld [vmem:[%s374 + $0x3] sm:$0x1]
      %v672 = vlaneseq
      %v673 = vshrl.u32 %v672, 7
      %v674 = vsub.s32 0, %v673
      %v675 = vrot.slane %v671, %v674
      %v677 = vsel %vm487, %v661, 0
      %679 = vmatprep.subr.mxu0 0.0
      %680 = vmatpush1.msra.mxu0 0.0
      %681 = vmatprep.subr.mxu0 0.0
      %682 = vmatpush1.msra.mxu0 0.0
      %683 = vmatprep.subr.mxu0 0.0
      %684 = vmatpush1.msra.mxu0 0.0
      %685 = vmatprep.subr.mxu0 0.0
      %686 = vmatpush1.msra.mxu0 0.0
      %687 = vmatprep.subr.mxu0 0.0
      %688 = vmatpush1.msra.mxu0 0.0
      %689 = vmatprep.subr.mxu0 0.0
      %690 = vmatpush1.msra.mxu0 0.0
      %691 = vmatprep.subr.mxu0 0.0
      %692 = vmatpush1.msra.mxu0 0.0
      %693 = vmatprep.subr.mxu0 0.0
      %694 = vmatpush1.msra.mxu0 0.0
      %695 = vmatprep.subr.mxu0 0.0
      %696 = vmatpush1.msra.mxu0 %v670
      %697 = vmatprep.subr.mxu0 0.0
      %698 = vmatpush1.msra.mxu0 %v669
      %699 = vmatprep.subr.mxu0 0.0
      %700 = vmatpush1.msra.mxu0 %v668
      %701 = vmatprep.subr.mxu0 0.0
      %702 = vmatpush1.msra.mxu0 %v667
      %703 = vmatprep.subr.mxu0 0.0
      %704 = vmatpush1.msra.mxu0 %v666
      %705 = vmatprep.subr.mxu0 0.0
      %706 = vmatpush1.msra.mxu0 %v665
      %707 = vmatprep.subr.mxu0 0.0
      %708 = vmatpush1.msra.mxu0 %v664
      %709 = vmatprep.subr.mxu0 0.0
      %710 = vmatpush1.msra.mxu0 %v663
      %711 = vmatprep.subr.mxu0 0.0
      %712 = vmatpush2.msra.mxu0 0.0
      %713 = vmatprep.subr.mxu0 0.0
      %714 = vmatpush2.msra.mxu0 0.0
      %715 = vmatprep.subr.mxu0 0.0
      %716 = vmatpush2.msra.mxu0 0.0
      %717 = vmatprep.subr.mxu0 0.0
      %718 = vmatpush2.msra.mxu0 0.0
      %719 = vmatprep.subr.mxu0 0.0
      %720 = vmatpush2.msra.mxu0 0.0
      %721 = vmatprep.subr.mxu0 0.0
      %722 = vmatpush2.msra.mxu0 0.0
      %723 = vmatprep.subr.mxu0 0.0
      %724 = vmatpush2.msra.mxu0 0.0
      %725 = vmatprep.subr.mxu0 0.0
      %726 = vmatpush2.msra.mxu0 0.0
      %727 = vmatprep.subr.mxu0 0.0
      %728 = vmatpush2.msra.mxu0 0.0
      %729 = vmatprep.subr.mxu0 0.0
      %730 = vmatpush2.msra.mxu0 0.0
      %731 = vmatprep.subr.mxu0 0.0
      %732 = vmatpush2.msra.mxu0 0.0
      %733 = vmatprep.subr.mxu0 0.0
      %734 = vmatpush2.msra.mxu0 0.0
      %735 = vmatprep.subr.mxu0 0.0
      %736 = vmatpush2.msra.mxu0 0.0
      %737 = vmatprep.subr.mxu0 0.0
      %738 = vmatpush2.msra.mxu0 0.0
      %739 = vmatprep.subr.mxu0 0.0
      %740 = vmatpush2.msra.mxu0 0.0
      %741 = vmatprep.subr.mxu0 0.0
      %742 = vmatpush2.msra.mxu0 0.0
      %743 = vmatprep.mubr.f32.mxu0 0.0
      %744 = vmatmul.mubr.f32.gmra.mxu0 %v677
      %v745 = vpop.f32.mrf.mxu0
      %v746 = vadd.f32 %v675, %v745
      %v747 = vpop.f32.mrf.mxu0
      %748 = vdwg.mxu0
      %v749 = vxor.u32 %v746, 2147483648
      %v750 = vmul.f32 %v749, 1.442695
      %v751 = vpow.pop %v750
      %v752 = vadd.f32 %v751, 1.0
      %v753 = vrcp.pop %v752
      %v754 = vmul.f32 1.0, %v753
      %v755 = vmul.f32 %v746, %v754
      %v756 = vld [vmem:[%s370] sm:$0xff]
      %v757 = vld [vmem:[%s370 + $0x8] sm:$0xff]
      %v758 = vld [vmem:[%s370 + $0x10] sm:$0xff]
      %v759 = vld [vmem:[%s370 + $0x18] sm:$0xff]
      %v760 = vld [vmem:[%s370 + $0x20] sm:$0xff]
      %v761 = vld [vmem:[%s370 + $0x28] sm:$0xff]
      %v762 = vld [vmem:[%s370 + $0x30] sm:$0xff]
      %v763 = vld [vmem:[%s370 + $0x38] sm:$0xff]
      %v764 = vld [vmem:[%s374 + $0x4] sm:$0x1]
      %v765 = vlaneseq
      %v766 = vshrl.u32 %v765, 7
      %v767 = vsub.s32 0, %v766
      %v768 = vrot.slane %v764, %v767
      %v770 = vsel %vm487, %v755, 0
      %772 = vmatprep.subr.mxu0 0.0
      %773 = vmatpush1.msra.mxu0 0.0
      %774 = vmatprep.subr.mxu0 0.0
      %775 = vmatpush1.msra.mxu0 0.0
      %776 = vmatprep.subr.mxu0 0.0
      %777 = vmatpush1.msra.mxu0 0.0
      %778 = vmatprep.subr.mxu0 0.0
      %779 = vmatpush1.msra.mxu0 0.0
      %780 = vmatprep.subr.mxu0 0.0
      %781 = vmatpush1.msra.mxu0 0.0
      %782 = vmatprep.subr.mxu0 0.0
      %783 = vmatpush1.msra.mxu0 0.0
      %784 = vmatprep.subr.mxu0 0.0
      %785 = vmatpush1.msra.mxu0 0.0
      %786 = vmatprep.subr.mxu0 0.0
      %787 = vmatpush1.msra.mxu0 0.0
      %788 = vmatprep.subr.mxu0 0.0
      %789 = vmatpush1.msra.mxu0 %v763
      %790 = vmatprep.subr.mxu0 0.0
      %791 = vmatpush1.msra.mxu0 %v762
      %792 = vmatprep.subr.mxu0 0.0
      %793 = vmatpush1.msra.mxu0 %v761
      %794 = vmatprep.subr.mxu0 0.0
      %795 = vmatpush1.msra.mxu0 %v760
      %796 = vmatprep.subr.mxu0 0.0
      %797 = vmatpush1.msra.mxu0 %v759
      %798 = vmatprep.subr.mxu0 0.0
      %799 = vmatpush1.msra.mxu0 %v758
      %800 = vmatprep.subr.mxu0 0.0
      %801 = vmatpush1.msra.mxu0 %v757
      %802 = vmatprep.subr.mxu0 0.0
      %803 = vmatpush1.msra.mxu0 %v756
      %804 = vmatprep.subr.mxu0 0.0
      %805 = vmatpush2.msra.mxu0 0.0
      %806 = vmatprep.subr.mxu0 0.0
      %807 = vmatpush2.msra.mxu0 0.0
      %808 = vmatprep.subr.mxu0 0.0
      %809 = vmatpush2.msra.mxu0 0.0
      %810 = vmatprep.subr.mxu0 0.0
      %811 = vmatpush2.msra.mxu0 0.0
      %812 = vmatprep.subr.mxu0 0.0
      %813 = vmatpush2.msra.mxu0 0.0
      %814 = vmatprep.subr.mxu0 0.0
      %815 = vmatpush2.msra.mxu0 0.0
      %816 = vmatprep.subr.mxu0 0.0
      %817 = vmatpush2.msra.mxu0 0.0
      %818 = vmatprep.subr.mxu0 0.0
      %819 = vmatpush2.msra.mxu0 0.0
      %820 = vmatprep.subr.mxu0 0.0
      %821 = vmatpush2.msra.mxu0 0.0
      %822 = vmatprep.subr.mxu0 0.0
      %823 = vmatpush2.msra.mxu0 0.0
      %824 = vmatprep.subr.mxu0 0.0
      %825 = vmatpush2.msra.mxu0 0.0
      %826 = vmatprep.subr.mxu0 0.0
      %827 = vmatpush2.msra.mxu0 0.0
      %828 = vmatprep.subr.mxu0 0.0
      %829 = vmatpush2.msra.mxu0 0.0
      %830 = vmatprep.subr.mxu0 0.0
      %831 = vmatpush2.msra.mxu0 0.0
      %832 = vmatprep.subr.mxu0 0.0
      %833 = vmatpush2.msra.mxu0 0.0
      %834 = vmatprep.subr.mxu0 0.0
      %835 = vmatpush2.msra.mxu0 0.0
      %836 = vmatprep.mubr.f32.mxu0 0.0
      %837 = vmatmul.mubr.f32.gmra.mxu0 %v770
      %v838 = vpop.f32.mrf.mxu0
      %v839 = vadd.f32 %v768, %v838
      %v840 = vpop.f32.mrf.mxu0
      %841 = vdwg.mxu0
      %v842 = vlaneseq
      %v843 = vand.u32 %v842, 127
      %vm844 = vcmp.ge.s32.totalorder %v843, 18
      %vm845 = vcmp.lt.s32.totalorder %v843, 36
      %vm846 = vmand %vm844, %vm845
      %v847 = vld [vmem:[%s5] sm:$0x1]
      %v848 = vld [vmem:[%s6] sm:$0x1]
      %v850 = vlaneseq
      %v851 = vshrl.u32 %v850, 7
      %v852 = vsub.s32 0, %v851
      %v853 = vrot.slane %v847, %v852
      %v855 = vsub.f32 %v853, %v839
      %v856 = vmax.f32 %v855, 0.0
      %vm857 = vcmp.ne.f32.partialorder %v855, %v855
      %v858 = vadd.f32 %v855, 0.0
      %v859 = vand.u32 2147483647, %v855
      %v860 = vsub.f32 0.0, %v859
      %v861 = vmul.f32 %v860, 1.442695
      %v862 = vpow.pop %v861
      %v863 = vadd.f32 %v862, 1.0
      %v864 = vlog2.pop %v863
      %v865 = vmul.f32 %v864, 0.6931472
      %v866 = vmul.f32 -0.5, %v862
      %v867 = vadd.f32 %v866, 1.0
      %v868 = vmul.f32 %v867, %v862
      %v869 = vand.u32 2147483647, %v862
      %vm870 = vcmp.lt.f32.partialorder %v869, 0.0004427343
      %v871 = vsel %vm870, %v868, %v865
      %v872 = vadd.f32 %v856, %v871
      %v873 = vsel %vm857, %v858, %v872
      %v874 = vsub.f32 %v853, %v873
      %v876 = vlaneseq
      %v877 = vshrl.u32 %v876, 7
      %v878 = vsub.s32 0, %v877
      %v879 = vrot.slane %v848, %v878
      %v881 = vsub.f32 %v874, %v879
      %v882 = vmax.f32 %v881, 0.0
      %vm883 = vcmp.ne.f32.partialorder %v881, %v881
      %v884 = vadd.f32 %v881, 0.0
      %v885 = vand.u32 2147483647, %v881
      %v886 = vsub.f32 0.0, %v885
      %v887 = vmul.f32 %v886, 1.442695
      %v888 = vpow.pop %v887
      %v889 = vadd.f32 %v888, 1.0
      %v890 = vlog2.pop %v889
      %v891 = vmul.f32 %v890, 0.6931472
      %v892 = vmul.f32 -0.5, %v888
      %v893 = vadd.f32 %v892, 1.0
      %v894 = vmul.f32 %v893, %v888
      %v895 = vand.u32 2147483647, %v888
      %vm896 = vcmp.lt.f32.partialorder %v895, 0.0004427343
      %v897 = vsel %vm896, %v894, %v891
      %v898 = vadd.f32 %v882, %v897
      %v899 = vsel %vm883, %v884, %v898
      %v900 = vadd.f32 %v879, %v899
      %v901 = vmul.f32 %v900, 1.442695
      %v902 = vpow.pop %v901
      %v903 = vsel %vm846, %v902, %v839
      %vm904 = vcmask 883712
      %905 = vst.msk [vmem:[%s381] sm:$0xff] %vm904, %v903
      %p906 = scmp.lt.s32.totalorder %s22, 3
      %s907 = scalar_select %p906, %s22, 3
      %p908 = scmp.lt.s32.totalorder %s23, 0
      %s909 = scalar_select %p908, %s23, 0
      %s910 = sadd.s32 %s909, %s907
      %s911 = smul.addr %s910, 8
      %s912 = scalar_lea.vmem %s7, %s911
      // Predicated region
      $region49: #{ensemble_model_forward.1} parent=47 // pred_check
        %p913 = pneg %p224
      $region50: #{ensemble_model_forward.1} parent=47 // pred_check_branch
        %915 = sbr.rel (%p913) target = $region52
      $region51: #{ensemble_model_forward.1} parent=47 // pred_region
        _
      $region52: #{ensemble_model_forward.1} parent=47 // pred_fallthru
        _
    $region48: #{ensemble_model_forward.1} parent=5 // pred_fallthru
      _
    %p916 = scmp.le.s32.totalorder 2, %s13
    // Predicated region
    $region53: #{ensemble_model_forward.1} parent=5 // pred_check
      %p917 = pneg %p916
    $region54: #{ensemble_model_forward.1} parent=5 // pred_check_branch
      %919 = sbr.rel (%p917) target = $region56
    $region55: #{ensemble_model_forward.1} parent=5 // pred_region
      %s920 = ssub.s32 %s13, 2
      // Predicated region
      $region57: #{ensemble_model_forward.1} parent=55 // pred_check
        %p921 = pneg %p230
      $region58: #{ensemble_model_forward.1} parent=55 // pred_check_branch
        %923 = sbr.rel (%p921) target = $region60
      $region59: #{ensemble_model_forward.1} parent=55 // pred_region
        %p924 = scmp.lt.s32.totalorder %s24, 3
        %s925 = scalar_select %p924, %s24, 3
        %p926 = scmp.lt.s32.totalorder %s25, 0
        %s927 = scalar_select %p926, %s25, 0
        %s928 = sadd.s32 %s927, %s925
        %s929 = smul.addr %s928, 8
        %s930 = scalar_lea.vmem %s7, %s929
      $region60: #{ensemble_model_forward.1} parent=55 // pred_fallthru
        _
    $region56: #{ensemble_model_forward.1} parent=5 // pred_fallthru
      _
  $region6: #{ensemble_model_forward.1} parent=0 // loop_footer
    %s17 = sadd.s32 1, %s13
  $region7: #{ensemble_model_forward.1} parent=0 // loop_footer_branch
    %12 = sbr.rel target = $region3
  $region8: #{ensemble_model_forward.1} parent=0 // loop_exit
    _

</llo_original>
